<compile_context>
chip_gen: v7x
topology: tpu7x:2x2x1
jax: 0.10.0
libtpu: 0.0.40
codegen_flags: <defaults>
</compile_context>

<pallas_src>
import jax
import jax.numpy as jnp
from jax.experimental import pallas as pl
from jax.experimental.pallas import tpu as pltpu

WIDTH = 64
LAMBDA_A = 0.5  # stand-in for args.lambda_a (compile-time constant)


def _bce_with_logits_mean(z, t):
    """Mean BCE of sigmoid(z) against targets t, computed in logit space.

    -log(sigmoid(z)) = softplus(-z), -log(1 - sigmoid(z)) = softplus(z); the
    shared log1p(exp(-|z|)) term is computed once.  min(., 100) mirrors
    torch.nn.BCELoss's clamp of log terms at -100 (differs from BCELoss only
    deep inside sigmoid saturation).
    """
    soft = jnp.log1p(jnp.exp(-jnp.abs(z)))
    neg_log_p = jnp.minimum(jnp.maximum(-z, 0.0) + soft, 100.0)    # -log(p)
    neg_log_1mp = jnp.minimum(jnp.maximum(z, 0.0) + soft, 100.0)   # -log(1-p)
    return jnp.mean(t * neg_log_p + (1.0 - t) * neg_log_1mp)


def enc3c_kernel(x_ref, bigw_ref, tbl_ref, out_ref):
    x = x_ref[...].astype(jnp.float32)
    BB = x[:, 0:1]   # x[:, 0].unsqueeze(1)
    V1 = x[:, 1:2]
    V2 = x[:, 2:3]

    # Packed [8, 128] parameter table (lanes 0:63 = branch 1, 64:127 = branch 2).
    mul_bb = tbl_ref[0:1, :]    # [fc1_1 weight | fc1_2 column acting on BB]
    mul_v1 = tbl_ref[1:2, :]    # [zeros        | fc1_2 column acting on V1]
    b1 = tbl_ref[2:3, :]        # [fc1_1 bias   | fc1_2 bias]
    b3 = tbl_ref[3:4, :]        # [fc3_1 bias   | fc3_2 bias]
    w5_1 = tbl_ref[4:5, :]      # [fc5_1 weight | zeros]
    w5_2 = tbl_ref[5:6, :]      # [zeros        | fc5_2 weight]
    b51 = tbl_ref[6:7, 0:1]     # fc5_1 bias (scalar)
    b52 = tbl_ref[6:7, 1:2]     # fc5_2 bias (scalar)

    # First layer for BOTH branches: one full-vreg mul-add (BB / V1 broadcast
    # exactly once each), one relu.  cat(V1, BB) is folded into the mul rows.
    h = jnp.maximum(BB * mul_bb + V1 * mul_v1 + b1, 0.0)           # [B, 128]

    # Second layer for both branches: ONE block-diagonal [128,128] MXU matmul.
    h = jnp.maximum(
        jnp.dot(h, bigw_ref[...], preferred_element_type=jnp.float32) + b3, 0.0)

    # fc5 heads: masked lane reductions (off-branch lanes are zero in w5 rows).
    z1 = jnp.sum(h * w5_1, axis=-1, keepdims=True) + b51           # [B, 1] logits
    z2 = jnp.sum(h * w5_2, axis=-1, keepdims=True) + b52

    # BCE losses in logit space.  (V1/V2 are .detach()'d targets in PyTorch;
    # irrelevant in a forward-only kernel.)
    loss1 = _bce_with_logits_mean(z1, V1)
    loss2 = _bce_with_logits_mean(z2, V2)
    total = LAMBDA_A * loss1 + loss2

    v1 = jax.nn.sigmoid(z1)
    v2 = jax.nn.sigmoid(z2)

    # Single full-ref store: [sigmoid(z1) | sigmoid(z2) | loss | loss].
    B = v1.shape[0]
    lane = jax.lax.broadcasted_iota(jnp.int32, (B, 4), 1)
    out_ref[...] = jnp.where(lane == 0, v1, jnp.where(lane == 1, v2, total))
    # TODO(synk): the PyTorch module's print() side-effects are not reproduced.


def pack_params(params):
    """Pack six (weight, bias) Linear params (PyTorch [out,in] layout) into two
    lane-dense slabs:
      * big_w : [128,128] block-diagonal diag(W31.T, W32.T) for a single
                x @ W.T style MXU pass covering both branches,
      * tbl   : [8,128] row table (one f32 vreg tile) with branch-1 params in
                lanes 0:63 and branch-2 params in lanes 64:127.
    Call once per parameter set (hoisted out of the per-forward path).
    """
    (w11, b11), (w31, b31), (w51, b51), (w12, b12), (w32, b32), (w52, b52) = params
    z64 = jnp.zeros((WIDTH,), jnp.float32)
    b5_row = jnp.zeros((2 * WIDTH,), jnp.float32).at[0].set(b51[0]).at[1].set(b52[0])
    tbl = jnp.stack([
        jnp.concatenate([w11[:, 0], w12[:, 1]]),   # row 0: BB multiplier
        jnp.concatenate([z64, w12[:, 0]]),         # row 1: V1 multiplier
        jnp.concatenate([b11, b12]),               # row 2: first-layer bias
        jnp.concatenate([b31, b32]),               # row 3: second-layer bias
        jnp.concatenate([w51[0, :], z64]),         # row 4: fc5_1 weight (masked)
        jnp.concatenate([z64, w52[0, :]]),         # row 5: fc5_2 weight (masked)
        b5_row,                                    # row 6: fc5 biases in lanes 0,1
        jnp.zeros((2 * WIDTH,), jnp.float32),      # row 7: pad to a full vreg tile
    ]).astype(jnp.float32)                         # [8, 128]

    big_w = jnp.zeros((2 * WIDTH, 2 * WIDTH), jnp.float32)
    big_w = big_w.at[:WIDTH, :WIDTH].set(w31.T)
    big_w = big_w.at[WIDTH:, WIDTH:].set(w32.T)    # [128, 128]
    return big_w, tbl


@jax.jit
def _enc3c_pallas(x, big_w, tbl):
    B = x.shape[0]
    vmem = pl.BlockSpec(memory_space=pltpu.MemorySpace.VMEM)
    out = pl.pallas_call(
        enc3c_kernel,
        out_shape=jax.ShapeDtypeStruct((B, 4), jnp.float32),
        in_specs=[vmem, vmem, vmem],
        out_specs=vmem,
    )(x, big_w, tbl)
    return out[:, 0:1], out[:, 1:2], out[0, 2]


def make_enc_3_c(params):
    """Pack params once; return a jitted forward fn x -> (v1_r, v2_r, loss)."""
    big_w, tbl = pack_params(params)

    def forward(x):
        return _enc3c_pallas(x, big_w, tbl)

    return forward


def enc_3_c_forward(x, params):
    """Convenience one-shot API (packs per call; prefer make_enc_3_c in loops)."""
    big_w, tbl = pack_params(params)
    return _enc3c_pallas(x, big_w, tbl)


def _init_linear(key, fan_in, fan_out):
    # PyTorch nn.Linear default init: U(-1/sqrt(fan_in), 1/sqrt(fan_in)),
    # weight shape [out, in], bias shape [out].
    kw, kb = jax.random.split(key)
    bound = 1.0 / (fan_in ** 0.5)
    w = jax.random.uniform(kw, (fan_out, fan_in), jnp.float32, -bound, bound)
    b = jax.random.uniform(kb, (fan_out,), jnp.float32, -bound, bound)
    return w, b


def init_params(key):
    keys = jax.random.split(key, 6)
    return (
        _init_linear(keys[0], 1, WIDTH),       # fc1_1
        _init_linear(keys[1], WIDTH, WIDTH),   # fc3_1
        _init_linear(keys[2], WIDTH, 1),       # fc5_1
        _init_linear(keys[3], 2, WIDTH),       # fc1_2
        _init_linear(keys[4], WIDTH, WIDTH),   # fc3_2
        _init_linear(keys[5], WIDTH, 1),       # fc5_2
    )


def enc_3_c_reference(x, params):
    """Pure-JAX reference matching the PyTorch forward (prob-space BCELoss)."""
    (w11, b11), (w31, b31), (w51, b51), (w12, b12), (w32, b32), (w52, b52) = params
    BB, V1, V2 = x[:, 0:1], x[:, 1:2], x[:, 2:3]
    h1 = jnp.maximum(BB @ w11.T + b11, 0.0)
    h1 = jnp.maximum(h1 @ w31.T + b31, 0.0)
    v1 = jax.nn.sigmoid(h1 @ w51.T + b51)
    h2 = jnp.maximum(jnp.concatenate([V1, BB], axis=1) @ w12.T + b12, 0.0)
    h2 = jnp.maximum(h2 @ w32.T + b32, 0.0)
    v2 = jax.nn.sigmoid(h2 @ w52.T + b52)

    def bce(p, t):
        lp = jnp.maximum(jnp.log(p), -100.0)
        l1p = jnp.maximum(jnp.log(1.0 - p), -100.0)
        return -jnp.mean(t * lp + (1.0 - t) * l1p)

    return v1, v2, LAMBDA_A * bce(v1, V1) + bce(v2, V2)


if __name__ == "__main__":
    root = jax.random.PRNGKey(0)
    k_x, k_p = jax.random.split(root)

    B = 8
    # Inputs in [0, 1]: columns 1 and 2 serve as BCE targets, so they must be
    # valid probabilities (as the original training data would be).
    x = jax.random.uniform(k_x, (B, 3), jnp.float32)
    params = init_params(k_p)

    forward = make_enc_3_c(params)          # params packed once, jitted wrapper
    v1_r, v2_r, total_loss = forward(x)
    jax.block_until_ready((v1_r, v2_r, total_loss))

    # Shape / range sanity.
    assert v1_r.shape == (B, 1) and v2_r.shape == (B, 1) and total_loss.shape == ()
    assert bool(jnp.all((v1_r >= 0.0) & (v1_r <= 1.0)))
    assert bool(jnp.all((v2_r >= 0.0) & (v2_r <= 1.0)))
    assert bool(jnp.isfinite(total_loss))

    # Numerical check against the pure-JAX reference of the PyTorch forward.
    v1_ref, v2_ref, loss_ref = enc_3_c_reference(x, params)
    assert bool(jnp.allclose(v1_r, v1_ref, rtol=1e-4, atol=1e-4))
    assert bool(jnp.allclose(v2_r, v2_ref, rtol=1e-4, atol=1e-4))
    assert bool(jnp.allclose(total_loss, loss_ref, rtol=1e-4, atol=1e-4))

    print("KERNEL_OK")
</pallas_src>

<mosaic_0001>
module attributes {stable_mosaic.version = 11 : i64} {
  func.func @enc3c_kernel(%arg0: memref<8x3xf32, #tpu.memory_space<vmem>>, %arg1: memref<128x128xf32, #tpu.memory_space<vmem>>, %arg2: memref<8x128xf32, #tpu.memory_space<vmem>>, %arg3: memref<8x4xf32, #tpu.memory_space<vmem>>) attributes {dimension_semantics = [], scalar_prefetch = 0 : i64, scratch_operands = 0 : i64, tpu.core_type = #tpu.core_type<tc>} {
    %c0 = arith.constant 0 : index
    %c0_0 = arith.constant 0 : index
    %0 = vector.load %arg0[%c0, %c0_0] : memref<8x3xf32, #tpu.memory_space<vmem>>, vector<8x3xf32>
    %1 = vector.extract_strided_slice %0 {offsets = [0, 0], sizes = [8, 1], strides = [1, 1]} : vector<8x3xf32> to vector<8x1xf32>
    %2 = vector.extract_strided_slice %0 {offsets = [0, 1], sizes = [8, 1], strides = [1, 1]} : vector<8x3xf32> to vector<8x1xf32>
    %3 = vector.extract_strided_slice %0 {offsets = [0, 2], sizes = [8, 1], strides = [1, 1]} : vector<8x3xf32> to vector<8x1xf32>
    %c0_1 = arith.constant 0 : index
    %c0_2 = arith.constant 0 : index
    %4 = vector.load %arg2[%c0_1, %c0_2] : memref<8x128xf32, #tpu.memory_space<vmem>>, vector<1x128xf32>
    %c1 = arith.constant 1 : index
    %c0_3 = arith.constant 0 : index
    %5 = vector.load %arg2[%c1, %c0_3] : memref<8x128xf32, #tpu.memory_space<vmem>>, vector<1x128xf32>
    %c2 = arith.constant 2 : index
    %c0_4 = arith.constant 0 : index
    %6 = vector.load %arg2[%c2, %c0_4] : memref<8x128xf32, #tpu.memory_space<vmem>>, vector<1x128xf32>
    %c3 = arith.constant 3 : index
    %c0_5 = arith.constant 0 : index
    %7 = vector.load %arg2[%c3, %c0_5] : memref<8x128xf32, #tpu.memory_space<vmem>>, vector<1x128xf32>
    %c4 = arith.constant 4 : index
    %c0_6 = arith.constant 0 : index
    %8 = vector.load %arg2[%c4, %c0_6] : memref<8x128xf32, #tpu.memory_space<vmem>>, vector<1x128xf32>
    %c5 = arith.constant 5 : index
    %c0_7 = arith.constant 0 : index
    %9 = vector.load %arg2[%c5, %c0_7] : memref<8x128xf32, #tpu.memory_space<vmem>>, vector<1x128xf32>
    %c6 = arith.constant 6 : index
    %c0_8 = arith.constant 0 : index
    %10 = vector.load %arg2[%c6, %c0_8] : memref<8x128xf32, #tpu.memory_space<vmem>>, vector<1x1xf32>
    %c6_9 = arith.constant 6 : index
    %c1_10 = arith.constant 1 : index
    %11 = vector.load %arg2[%c6_9, %c1_10] : memref<8x128xf32, #tpu.memory_space<vmem>>, vector<1x1xf32>
    %12 = vector.broadcast %1 : vector<8x1xf32> to vector<8x128xf32>
    %13 = vector.broadcast %4 : vector<1x128xf32> to vector<8x128xf32>
    %14 = arith.mulf %12, %13 : vector<8x128xf32>
    %15 = vector.broadcast %2 : vector<8x1xf32> to vector<8x128xf32>
    %16 = vector.broadcast %5 : vector<1x128xf32> to vector<8x128xf32>
    %17 = arith.mulf %15, %16 : vector<8x128xf32>
    %18 = arith.addf %14, %17 : vector<8x128xf32>
    %19 = vector.broadcast %6 : vector<1x128xf32> to vector<8x128xf32>
    %20 = arith.addf %18, %19 : vector<8x128xf32>
    %cst = arith.constant 0.000000e+00 : f32
    %21 = vector.broadcast %cst : f32 to vector<8x128xf32>
    %22 = arith.maximumf %20, %21 : vector<8x128xf32>
    %c0_11 = arith.constant 0 : index
    %c0_12 = arith.constant 0 : index
    %23 = vector.load %arg1[%c0_11, %c0_12] : memref<128x128xf32, #tpu.memory_space<vmem>>, vector<128x128xf32>
    %cst_13 = arith.constant dense<0.000000e+00> : vector<8x128xf32>
    %24 = tpu.matmul %22, %23, %cst_13 {dimension_numbers = #tpu.dot_dimension_numbers<[1], [0], [0], [1], [0, 0, 1, 1], [], []>} : vector<8x128xf32>, vector<128x128xf32>, vector<8x128xf32> -> vector<8x128xf32>
    %25 = vector.broadcast %7 : vector<1x128xf32> to vector<8x128xf32>
    %26 = arith.addf %24, %25 : vector<8x128xf32>
    %cst_14 = arith.constant 0.000000e+00 : f32
    %27 = vector.broadcast %cst_14 : f32 to vector<8x128xf32>
    %28 = arith.maximumf %26, %27 : vector<8x128xf32>
    %29 = vector.broadcast %8 : vector<1x128xf32> to vector<8x128xf32>
    %30 = arith.mulf %28, %29 : vector<8x128xf32>
    %cst_15 = arith.constant dense<0.000000e+00> : vector<8xf32>
    %31 = vector.multi_reduction <add>, %30, %cst_15 [1] : vector<8x128xf32> to vector<8xf32>
    %32 = vector.shape_cast %31 : vector<8xf32> to vector<8x1xf32>
    %33 = vector.broadcast %10 : vector<1x1xf32> to vector<8x1xf32>
    %34 = arith.addf %32, %33 : vector<8x1xf32>
    %35 = vector.broadcast %9 : vector<1x128xf32> to vector<8x128xf32>
    %36 = arith.mulf %28, %35 : vector<8x128xf32>
    %cst_16 = arith.constant dense<0.000000e+00> : vector<8xf32>
    %37 = vector.multi_reduction <add>, %36, %cst_16 [1] : vector<8x128xf32> to vector<8xf32>
    %38 = vector.shape_cast %37 : vector<8xf32> to vector<8x1xf32>
    %39 = vector.broadcast %11 : vector<1x1xf32> to vector<8x1xf32>
    %40 = arith.addf %38, %39 : vector<8x1xf32>
    %41 = math.absf %34 : vector<8x1xf32>
    %cst_17 = arith.constant 0.000000e+00 : f32
    %42 = vector.broadcast %cst_17 : f32 to vector<8x1xf32>
    %43 = arith.subf %42, %41 : vector<8x1xf32>
    %44 = math.exp %43 : vector<8x1xf32>
    %45 = math.log1p %44 : vector<8x1xf32>
    %cst_18 = arith.constant 0.000000e+00 : f32
    %46 = vector.broadcast %cst_18 : f32 to vector<8x1xf32>
    %47 = arith.subf %46, %34 : vector<8x1xf32>
    %cst_19 = arith.constant 0.000000e+00 : f32
    %48 = vector.broadcast %cst_19 : f32 to vector<8x1xf32>
    %49 = arith.maximumf %47, %48 : vector<8x1xf32>
    %50 = arith.addf %49, %45 : vector<8x1xf32>
    %cst_20 = arith.constant 1.000000e+02 : f32
    %51 = vector.broadcast %cst_20 : f32 to vector<8x1xf32>
    %52 = arith.minimumf %50, %51 : vector<8x1xf32>
    %cst_21 = arith.constant 0.000000e+00 : f32
    %53 = vector.broadcast %cst_21 : f32 to vector<8x1xf32>
    %54 = arith.maximumf %34, %53 : vector<8x1xf32>
    %55 = arith.addf %54, %45 : vector<8x1xf32>
    %cst_22 = arith.constant 1.000000e+02 : f32
    %56 = vector.broadcast %cst_22 : f32 to vector<8x1xf32>
    %57 = arith.minimumf %55, %56 : vector<8x1xf32>
    %58 = arith.mulf %2, %52 : vector<8x1xf32>
    %cst_23 = arith.constant 1.000000e+00 : f32
    %59 = vector.broadcast %cst_23 : f32 to vector<8x1xf32>
    %60 = arith.subf %59, %2 : vector<8x1xf32>
    %61 = arith.mulf %60, %57 : vector<8x1xf32>
    %62 = arith.addf %58, %61 : vector<8x1xf32>
    %63 = vector.shape_cast %62 : vector<8x1xf32> to vector<1x8x1xf32>
    %cst_24 = arith.constant dense<0.000000e+00> : vector<1xf32>
    %64 = vector.multi_reduction <add>, %63, %cst_24 [1, 2] : vector<1x8x1xf32> to vector<1xf32>
    %65 = vector.shape_cast %64 : vector<1xf32> to vector<1x1x1xf32>
    %66 = vector.extract %65[0, 0, 0] : f32 from vector<1x1x1xf32>
    %cst_25 = arith.constant 8.000000e+00 : f32
    %67 = arith.divf %66, %cst_25 : f32
    %68 = math.absf %40 : vector<8x1xf32>
    %cst_26 = arith.constant 0.000000e+00 : f32
    %69 = vector.broadcast %cst_26 : f32 to vector<8x1xf32>
    %70 = arith.subf %69, %68 : vector<8x1xf32>
    %71 = math.exp %70 : vector<8x1xf32>
    %72 = math.log1p %71 : vector<8x1xf32>
    %cst_27 = arith.constant 0.000000e+00 : f32
    %73 = vector.broadcast %cst_27 : f32 to vector<8x1xf32>
    %74 = arith.subf %73, %40 : vector<8x1xf32>
    %cst_28 = arith.constant 0.000000e+00 : f32
    %75 = vector.broadcast %cst_28 : f32 to vector<8x1xf32>
    %76 = arith.maximumf %74, %75 : vector<8x1xf32>
    %77 = arith.addf %76, %72 : vector<8x1xf32>
    %cst_29 = arith.constant 1.000000e+02 : f32
    %78 = vector.broadcast %cst_29 : f32 to vector<8x1xf32>
    %79 = arith.minimumf %77, %78 : vector<8x1xf32>
    %cst_30 = arith.constant 0.000000e+00 : f32
    %80 = vector.broadcast %cst_30 : f32 to vector<8x1xf32>
    %81 = arith.maximumf %40, %80 : vector<8x1xf32>
    %82 = arith.addf %81, %72 : vector<8x1xf32>
    %cst_31 = arith.constant 1.000000e+02 : f32
    %83 = vector.broadcast %cst_31 : f32 to vector<8x1xf32>
    %84 = arith.minimumf %82, %83 : vector<8x1xf32>
    %85 = arith.mulf %3, %79 : vector<8x1xf32>
    %cst_32 = arith.constant 1.000000e+00 : f32
    %86 = vector.broadcast %cst_32 : f32 to vector<8x1xf32>
    %87 = arith.subf %86, %3 : vector<8x1xf32>
    %88 = arith.mulf %87, %84 : vector<8x1xf32>
    %89 = arith.addf %85, %88 : vector<8x1xf32>
    %90 = vector.shape_cast %89 : vector<8x1xf32> to vector<1x8x1xf32>
    %cst_33 = arith.constant dense<0.000000e+00> : vector<1xf32>
    %91 = vector.multi_reduction <add>, %90, %cst_33 [1, 2] : vector<1x8x1xf32> to vector<1xf32>
    %92 = vector.shape_cast %91 : vector<1xf32> to vector<1x1x1xf32>
    %93 = vector.extract %92[0, 0, 0] : f32 from vector<1x1x1xf32>
    %cst_34 = arith.constant 8.000000e+00 : f32
    %94 = arith.divf %93, %cst_34 : f32
    %cst_35 = arith.constant 5.000000e-01 : f32
    %95 = arith.mulf %cst_35, %67 : f32
    %96 = arith.addf %95, %94 : f32
    %97 = arith.negf %34 : vector<8x1xf32>
    %98 = math.exp %97 : vector<8x1xf32>
    %cst_36 = arith.constant 1.000000e+00 : f32
    %99 = vector.broadcast %cst_36 : f32 to vector<8x1xf32>
    %100 = arith.addf %99, %98 : vector<8x1xf32>
    %101 = arith.divf %99, %100 : vector<8x1xf32>
    %102 = arith.negf %40 : vector<8x1xf32>
    %103 = math.exp %102 : vector<8x1xf32>
    %cst_37 = arith.constant 1.000000e+00 : f32
    %104 = vector.broadcast %cst_37 : f32 to vector<8x1xf32>
    %105 = arith.addf %104, %103 : vector<8x1xf32>
    %106 = arith.divf %104, %105 : vector<8x1xf32>
    %107 = tpu.iota {dimensions = array<i32: 1>} : vector<8x4xi32>
    %c0_i32 = arith.constant 0 : i32
    %108 = vector.broadcast %c0_i32 : i32 to vector<8x4xi32>
    %109 = arith.cmpi eq, %107, %108 : vector<8x4xi32>
    %c1_i32 = arith.constant 1 : i32
    %110 = vector.broadcast %c1_i32 : i32 to vector<8x4xi32>
    %111 = arith.cmpi eq, %107, %110 : vector<8x4xi32>
    %112 = vector.shape_cast %106 : vector<8x1xf32> to vector<8x1xf32>
    %113 = vector.broadcast %112 : vector<8x1xf32> to vector<8x4xf32>
    %114 = vector.broadcast %96 : f32 to vector<8x4xf32>
    %115 = arith.select %111, %113, %114 : vector<8x4xi1>, vector<8x4xf32>
    %116 = vector.shape_cast %101 : vector<8x1xf32> to vector<8x1xf32>
    %117 = vector.broadcast %116 : vector<8x1xf32> to vector<8x4xf32>
    %118 = arith.select %109, %117, %115 : vector<8x4xi1>, vector<8x4xf32>
    %c0_38 = arith.constant 0 : index
    %c0_39 = arith.constant 0 : index
    %119 = vector.load %arg3[%c0_38, %c0_39] : memref<8x4xf32, #tpu.memory_space<vmem>>, vector<8x4xf32>
    tpu.vector_store %arg3[%c0_38, %c0_39], %118 {strides = array<i32>} : memref<8x4xf32, #tpu.memory_space<vmem>>, vector<8x4xf32>,
    return
  }
}

</mosaic_0001>

<llo_original>
// kernel: _enc3c_pallas.1
$region0: #{_enc3c_pallas.1}
  #allocation0 [shape = 'u32[]', space=smem, size = 0x4, offset = 0x4, fixed_abs, tag = 'smem constant byte address 0x4 - core index']
  #allocation1 [shape = 'u32[144,128]{1,0:T(1,128)}', space=vmem, size = 0x12000, scoped, tag = 'internal scratch']
  %s0 = inlined_call_operand.vmem [shape: f32[8,3], index: 0, kind: input, shape index: {}]
  %s1 = inlined_call_operand.hbm [shape: f32[128,128], index: 1, kind: input, shape index: {}]
  %s2 = inlined_call_operand.vmem [shape: f32[8,128], index: 2, kind: input, shape index: {}]
  %s3 = inlined_call_operand.vmem [shape: f32[8,4], index: 3, kind: output, shape index: {}]
  %s4 = sld [smem:[#allocation0]]
  $region26: #{_enc3c_pallas.1} parent=0
    _
  %s6 = ssub.s32 1, %s4
  %s7 = scalar_select 0, %s6, %s4
  $region1: #{_enc3c_pallas.1} parent=0
    #allocation2 [shape = 'u8[65536]{0}', space=vmem, size = 0x10000, scoped, tag = 'input window, operand 1, single buffered']
    #allocation3 [shape = 's32[1]{0}', space=sflag, size = 0x4, scoped, tag = 'scoped memory for _enc3c_pallas.1']
    %8 = vsyncpa [#allocation3], 0
    // Predicated region
    $region2: #{_enc3c_pallas.1} parent=1 // pred_check
      _
    $region3: #{_enc3c_pallas.1} parent=1 // pred_check_branch
      %10 = sbr.rel (0) target = $region5
    $region4: #{_enc3c_pallas.1} parent=1 // pred_region
      _
    $region5: #{_enc3c_pallas.1} parent=1 // pred_fallthru
      _
    // Predicated region
    $region6: #{_enc3c_pallas.1} parent=1 // pred_check
      _
    $region7: #{_enc3c_pallas.1} parent=1 // pred_check_branch
      %12 = sbr.rel (0) target = $region9
    $region8: #{_enc3c_pallas.1} parent=1 // pred_region
      %s14 = ssub.s32 2048, 2048
      %15 = vsyncadd [#allocation3], %s14
      %s16 = sshll.u32 [#allocation2], 4
      %s17 = int_to_ptr.vmem [resolvable:$true] %s16
      %22 = dma.hbm_to_vmem [thread:$0]  %s1, 2048, %s17, [#allocation3], 128, 128, 8
    $region9: #{_enc3c_pallas.1} parent=1 // pred_fallthru
      _
    // Predicated region
    $region10: #{_enc3c_pallas.1} parent=1 // pred_check
      _
    $region11: #{_enc3c_pallas.1} parent=1 // pred_check_branch
      %24 = sbr.rel (0) target = $region13
    $region12: #{_enc3c_pallas.1} parent=1 // pred_region
      _
    $region13: #{_enc3c_pallas.1} parent=1 // pred_fallthru
      _
    // Predicated region
    $region14: #{_enc3c_pallas.1} parent=1 // pred_check
      _
    $region15: #{_enc3c_pallas.1} parent=1 // pred_check_branch
      %26 = sbr.rel (0) target = $region17
    $region16: #{_enc3c_pallas.1} parent=1 // pred_region
      %27 = dma.done [#allocation3], 2048
    $region17: #{_enc3c_pallas.1} parent=1 // pred_fallthru
      _
    %v28 = vld [vmem:[%s0] sm:$0xff]
    %v29 = vld [vmem:[%s2] sm:$0x1]
    %v30 = vld [vmem:[%s2 + $0x1] sm:$0x1]
    %v31 = vld [vmem:[%s2 + $0x2] sm:$0x1]
    %v32 = vld [vmem:[%s2 + $0x3] sm:$0x1]
    %v33 = vld [vmem:[%s2 + $0x4] sm:$0x1]
    %v34 = vld [vmem:[%s2 + $0x5] sm:$0x1]
    %v35 = vld [vmem:[%s2 + $0x6] sm:$0x1]
    %37 = vset.pattern.permute.xlu0 0
    %38 = vperm.xlu0 %37, %v28
    %v39 = vpop.permute.xlu0 %38
    %v41 = vlaneseq
    %v42 = vshrl.u32 %v41, 7
    %v43 = vsub.s32 0, %v42
    %v44 = vrot.slane %v29, %v43
    %v45 = vmul.f32 %v39, %v44
    %46 = vset.pattern.permute.xlu0 1
    %47 = vperm.xlu0 %46, %v28
    %v48 = vpop.permute.xlu0 %47
    %v50 = vlaneseq
    %v51 = vshrl.u32 %v50, 7
    %v52 = vsub.s32 0, %v51
    %v53 = vrot.slane %v30, %v52
    %v54 = vmul.f32 %v48, %v53
    %v55 = vadd.f32 %v45, %v54
    %v56 = vlaneseq
    %v57 = vshrl.u32 %v56, 7
    %v58 = vsub.s32 0, %v57
    %v59 = vrot.slane %v31, %v58
    %v60 = vadd.f32 %v55, %v59
    %v61 = vmax.f32 %v60, 0.0
    %v62 = vld [vmem:[#allocation2] sm:$0xff]
    %v63 = vld [vmem:[#allocation2 + $0x8] sm:$0xff]
    %v64 = vld [vmem:[#allocation2 + $0x10] sm:$0xff]
    %v65 = vld [vmem:[#allocation2 + $0x18] sm:$0xff]
    %v66 = vld [vmem:[#allocation2 + $0x20] sm:$0xff]
    %v67 = vld [vmem:[#allocation2 + $0x28] sm:$0xff]
    %v68 = vld [vmem:[#allocation2 + $0x30] sm:$0xff]
    %v69 = vld [vmem:[#allocation2 + $0x38] sm:$0xff]
    %v70 = vld [vmem:[#allocation2 + $0x40] sm:$0xff]
    %v71 = vld [vmem:[#allocation2 + $0x48] sm:$0xff]
    %v72 = vld [vmem:[#allocation2 + $0x50] sm:$0xff]
    %v73 = vld [vmem:[#allocation2 + $0x58] sm:$0xff]
    %v74 = vld [vmem:[#allocation2 + $0x60] sm:$0xff]
    %v75 = vld [vmem:[#allocation2 + $0x68] sm:$0xff]
    %v76 = vld [vmem:[#allocation2 + $0x70] sm:$0xff]
    %v77 = vld [vmem:[#allocation2 + $0x78] sm:$0xff]
    %v78 = vlaneseq
    %v79 = vshrl.u32 %v78, 7
    %v80 = vsub.s32 0, %v79
    %v81 = vrot.slane %v32, %v80
    %82 = vmatprep.subr.mxu0 0.0
    %83 = vmatpush1.msra.mxu0 %v62
    %84 = vmatprep.subr.mxu0 0.0
    %85 = vmatpush1.msra.mxu0 %v63
    %86 = vmatprep.subr.mxu0 0.0
    %87 = vmatpush1.msra.mxu0 %v64
    %88 = vmatprep.subr.mxu0 0.0
    %89 = vmatpush1.msra.mxu0 %v65
    %90 = vmatprep.subr.mxu0 0.0
    %91 = vmatpush1.msra.mxu0 %v66
    %92 = vmatprep.subr.mxu0 0.0
    %93 = vmatpush1.msra.mxu0 %v67
    %94 = vmatprep.subr.mxu0 0.0
    %95 = vmatpush1.msra.mxu0 %v68
    %96 = vmatprep.subr.mxu0 0.0
    %97 = vmatpush1.msra.mxu0 %v69
    %98 = vmatprep.subr.mxu0 0.0
    %99 = vmatpush1.msra.mxu0 %v70
    %100 = vmatprep.subr.mxu0 0.0
    %101 = vmatpush1.msra.mxu0 %v71
    %102 = vmatprep.subr.mxu0 0.0
    %103 = vmatpush1.msra.mxu0 %v72
    %104 = vmatprep.subr.mxu0 0.0
    %105 = vmatpush1.msra.mxu0 %v73
    %106 = vmatprep.subr.mxu0 0.0
    %107 = vmatpush1.msra.mxu0 %v74
    %108 = vmatprep.subr.mxu0 0.0
    %109 = vmatpush1.msra.mxu0 %v75
    %110 = vmatprep.subr.mxu0 0.0
    %111 = vmatpush1.msra.mxu0 %v76
    %112 = vmatprep.subr.mxu0 0.0
    %113 = vmatpush1.msra.mxu0 %v77
    %114 = vmatprep.subr.mxu0 0.0
    %115 = vmatpush1.msra.mxu0 0.0
    %116 = vmatprep.subr.mxu0 0.0
    %117 = vmatpush1.msra.mxu0 0.0
    %118 = vmatprep.subr.mxu0 0.0
    %119 = vmatpush1.msra.mxu0 0.0
    %120 = vmatprep.subr.mxu0 0.0
    %121 = vmatpush1.msra.mxu0 0.0
    %122 = vmatprep.subr.mxu0 0.0
    %123 = vmatpush1.msra.mxu0 0.0
    %124 = vmatprep.subr.mxu0 0.0
    %125 = vmatpush1.msra.mxu0 0.0
    %126 = vmatprep.subr.mxu0 0.0
    %127 = vmatpush1.msra.mxu0 0.0
    %128 = vmatprep.subr.mxu0 0.0
    %129 = vmatpush1.msra.mxu0 0.0
    %130 = vmatprep.subr.mxu0 0.0
    %131 = vmatpush1.msra.mxu0 0.0
    %132 = vmatprep.subr.mxu0 0.0
    %133 = vmatpush1.msra.mxu0 0.0
    %134 = vmatprep.subr.mxu0 0.0
    %135 = vmatpush1.msra.mxu0 0.0
    %136 = vmatprep.subr.mxu0 0.0
    %137 = vmatpush1.msra.mxu0 0.0
    %138 = vmatprep.subr.mxu0 0.0
    %139 = vmatpush1.msra.mxu0 0.0
    %140 = vmatprep.subr.mxu0 0.0
    %141 = vmatpush1.msra.mxu0 0.0
    %142 = vmatprep.subr.mxu0 0.0
    %143 = vmatpush1.msra.mxu0 0.0
    %144 = vmatprep.subr.mxu0 0.0
    %145 = vmatpush1.msra.mxu0 0.0
    %146 = vmatprep.mubr.f32.mxu0 0.0
    %147 = vmatmul.mubr.f32.gmra.mrb[0].mxu0 %v61
    %v148 = vpop.f32.mrb[0].mxu0
    %v149 = vadd.f32 %v81, %v148
    %v150 = vpop.f32.mrb[0].mxu0
    %151 = vdwg.mxu0
    %v152 = vmax.f32 %v149, 0.0
    %v153 = vlaneseq
    %v154 = vshrl.u32 %v153, 7
    %v155 = vsub.s32 0, %v154
    %v156 = vrot.slane %v33, %v155
    %v157 = vmul.f32 %v152, %v156
    %158 = vadd.xlane.f32.xlu0 %v157
    %v159 = vpop.xlane.xlu0 %158
    %v160 = vlaneseq
    %v161 = vshrl.u32 %v160, 7
    %v162 = vsub.s32 0, %v161
    %v163 = vrot.slane %v35, %v162
    %v164 = vadd.f32 %v159, %v163
    %v165 = vlaneseq
    %v166 = vshrl.u32 %v165, 7
    %v167 = vsub.s32 0, %v166
    %v168 = vrot.slane %v34, %v167
    %v169 = vmul.f32 %v152, %v168
    %170 = vadd.xlane.f32.xlu0 %v169
    %v171 = vpop.xlane.xlu0 %170
    %v172 = vadd.f32 %v171, %v163
    %v173 = vand.u32 2147483647, %v164
    %v174 = vsub.f32 0.0, %v173
    %v175 = vmul.f32 %v174, 1.442695
    %v176 = vpow.pop %v175
    %v177 = vadd.f32 %v176, 1.0
    %v178 = vlog2.pop %v177
    %v179 = vmul.f32 %v178, 0.6931472
    %v180 = vmul.f32 -0.5, %v176
    %v181 = vadd.f32 %v180, 1.0
    %v182 = vmul.f32 %v181, %v176
    %v183 = vand.u32 2147483647, %v176
    %vm184 = vcmp.lt.f32.partialorder %v183, 0.0004427343
    %v185 = vsel %vm184, %v182, %v179
    %v186 = vsub.f32 0.0, %v164
    %v187 = vmax.f32 %v186, 0.0
    %v188 = vadd.f32 %v187, %v185
    %v189 = vmin.f32 %v188, 100.0
    %v190 = vmax.f32 %v164, 0.0
    %v191 = vadd.f32 %v190, %v185
    %v192 = vmin.f32 %v191, 100.0
    %194 = vrot.lane.b32.xlu0 %v189, 1
    %v195 = vpop.permute.xlu0 %194
    %v197 = vmul.f32 %v28, %v195
    %v198 = vsub.f32 1.0, %v28
    %200 = vrot.lane.b32.xlu0 %v192, 1
    %v201 = vpop.permute.xlu0 %200
    %v203 = vmul.f32 %v198, %v201
    %v204 = vadd.f32 %v197, %v203
    %206 = vrot.lane.b32.xlu0 %v204, 127
    %v207 = vpop.permute.xlu0 %206
    %vm209 = vcmask 7168
    %v210 = vsel %vm209, %v207, 0.0
    %211 = vadd.xlane.f32.xlu0 %v210
    %v212 = vpop.xlane.xlu0 %211
    %v213 = vrot.slane %v212, 4
    %v214 = vadd.f32 %v212, %v213
    %v215 = vrot.slane %v214, 2
    %v216 = vadd.f32 %v214, %v215
    %v217 = vrot.slane %v216, 1
    %v218 = vadd.f32 %v216, %v217
    %s219 = vtos %v218
    %v220 = vrcp.pop 8.0
    %s221 = vtos %v220
    %s222 = smul.f32 %s219, %s221
    %v223 = vand.u32 2147483647, %v172
    %v224 = vsub.f32 0.0, %v223
    %v225 = vmul.f32 %v224, 1.442695
    %v226 = vpow.pop %v225
    %v227 = vadd.f32 %v226, 1.0
    %v228 = vlog2.pop %v227
    %v229 = vmul.f32 %v228, 0.6931472
    %v230 = vmul.f32 -0.5, %v226
    %v231 = vadd.f32 %v230, 1.0
    %v232 = vmul.f32 %v231, %v226
    %v233 = vand.u32 2147483647, %v226
    %vm234 = vcmp.lt.f32.partialorder %v233, 0.0004427343
    %v235 = vsel %vm234, %v232, %v229
    %v236 = vsub.f32 0.0, %v172
    %v237 = vmax.f32 %v236, 0.0
    %v238 = vadd.f32 %v237, %v235
    %v239 = vmin.f32 %v238, 100.0
    %v240 = vmax.f32 %v172, 0.0
    %v241 = vadd.f32 %v240, %v235
    %v242 = vmin.f32 %v241, 100.0
    %244 = vrot.lane.b32.xlu0 %v239, 1
    %v245 = vpop.permute.xlu0 %244
    %v247 = vmul.f32 %v28, %v245
    %249 = vrot.lane.b32.xlu0 %v242, 1
    %v250 = vpop.permute.xlu0 %249
    %v252 = vmul.f32 %v198, %v250
    %v253 = vadd.f32 %v247, %v252
    %255 = vrot.lane.b32.xlu0 %v253, 126
    %v256 = vpop.permute.xlu0 %255
    %v258 = vsel %vm209, %v256, 0.0
    %259 = vadd.xlane.f32.xlu0 %v258
    %v260 = vpop.xlane.xlu0 %259
    %v261 = vrot.slane %v260, 4
    %v262 = vadd.f32 %v260, %v261
    %v263 = vrot.slane %v262, 2
    %v264 = vadd.f32 %v262, %v263
    %v265 = vrot.slane %v264, 1
    %v266 = vadd.f32 %v264, %v265
    %s267 = vtos %v266
    %v268 = vrcp.pop 8.0
    %s269 = vtos %v268
    %s270 = smul.f32 %s267, %s269
    %s271 = smul.f32 %s222, 0.5
    %s272 = sadd.f32 %s271, %s270
    %v273 = vxor.u32 %v164, 2147483648
    %v274 = vmul.f32 %v273, 1.442695
    %v275 = vpow.pop %v274
    %v276 = vadd.f32 %v275, 1.0
    %v277 = vrcp.pop %v276
    %v278 = vmul.f32 1.0, %v277
    %v279 = vxor.u32 %v172, 2147483648
    %v280 = vmul.f32 %v279, 1.442695
    %v281 = vpow.pop %v280
    %v282 = vadd.f32 %v281, 1.0
    %v283 = vrcp.pop %v282
    %v284 = vmul.f32 1.0, %v283
    %v285 = vlaneseq
    %v286 = vand.u32 %v285, 127
    %vm287 = vcmp.eq.s32.totalorder %v286, 0
    %vm288 = vcmp.eq.s32.totalorder %v286, 1
    %290 = vset.pattern.permute.xlu0 1
    %291 = vperm.xlu0 %290, %v284
    %v292 = vpop.permute.xlu0 %291
    %v294 = vstv %s272
    %v295 = vsel %vm288, %v292, %v294
    %297 = vset.pattern.permute.xlu0 0
    %298 = vperm.xlu0 %297, %v278
    %v299 = vpop.permute.xlu0 %298
    %v301 = vsel %vm287, %v299, %v295
    %vm302 = vcmask 31744
    %303 = vst.msk [vmem:[%s3] sm:$0xff] %vm302, %v301
    // Predicated region
    $region18: #{_enc3c_pallas.1} parent=1 // pred_check
      _
    $region19: #{_enc3c_pallas.1} parent=1 // pred_check_branch
      %305 = sbr.rel (0) target = $region21
    $region20: #{_enc3c_pallas.1} parent=1 // pred_region
      _
    $region21: #{_enc3c_pallas.1} parent=1 // pred_fallthru
      _
    // Predicated region
    $region22: #{_enc3c_pallas.1} parent=1 // pred_check
      _
    $region23: #{_enc3c_pallas.1} parent=1 // pred_check_branch
      %307 = sbr.rel (0) target = $region25
    $region24: #{_enc3c_pallas.1} parent=1 // pred_region
      _
    $region25: #{_enc3c_pallas.1} parent=1 // pred_fallthru
      _
    %308 = vsyncpa [#allocation3], 1

</llo_original>
